<compile_context>
chip_gen: v7x
topology: tpu7x:2x2x1
jax: 0.10.0
libtpu: 0.0.40
codegen_flags: <defaults>
</compile_context>

<pallas_src>
import jax
import jax.numpy as jnp
from jax.experimental import pallas as pl
from jax.experimental.pallas import tpu as pltpu

B = 2
C_COND = 3
H = W = 16
HW = H * W
LANES = 128
assert (B * HW) % LANES == 0 and HW % LANES == 0, "layout assumes lane-dense rows"
N_ROWS = (B * HW) // LANES          # sublane-dense rows for x / out   -> 4
ROWS_PER_BATCH = HW // LANES        # rows per batch element           -> 2
C_IN = 1 + C_COND                   # channels after torch.cat([x.unsqueeze(1), cond], 1)
N_PARAMS = C_IN + 3                 # conv weights (C_IN) + conv bias + t-scale + t-bias
N_SCAL = 2 + B                      # [w_x, t_scale, t_0 .. t_{B-1}]


def wrap_net_kernel(s_ref, x_ref, cp_ref, out_ref):
    """Fused: 1x1-conv (x channel only; cond part pre-folded) + affine(t).

    s_ref  (SMEM, (N_SCAL,)): [w_x, t_scale, t_0, ..., t_{B-1}]
    x_ref  (VMEM, (N_ROWS, LANES)): flattened x, batch-major rows
    cp_ref (VMEM, (N_ROWS, LANES)): precomputed sum_c w_c*cond_c + conv_bias + t_bias
    out_ref(VMEM, (N_ROWS, LANES))
    """
    # Hoist ALL SMEM scalar reads off the vector path.
    w_x = s_ref[0]
    t_scale = s_ref[1]
    t_vals = [s_ref[2 + b] for b in range(B)]

    # Per-row timestep column: rows [b*R, (b+1)*R) of the slab belong to batch b.
    # For B=2 this is a single select; no masked partial stores needed.
    row_ids = jax.lax.broadcasted_iota(jnp.int32, (N_ROWS, 1), 0)
    t_rows = jnp.full((N_ROWS, 1), t_vals[0], dtype=jnp.float32)
    for b in range(1, B):
        t_rows = jnp.where(row_ids >= b * ROWS_PER_BATCH, t_vals[b], t_rows)

    # Single unmasked full-slab store.
    out_ref[...] = x_ref[...] * w_x + cp_ref[...] + t_rows * t_scale


def wrap_init(cond, w):
    """One-time fold of the static condition / weights (done once per Wrap instance).

    cond: (B, C_COND, H, W) f32, w: (N_PARAMS,) f32
    Returns:
      cond_proj: (N_ROWS, LANES) f32  = sum_c w[1+c]*cond[:,c] + conv_bias + t_bias
      w_scal:    (2,) f32             = [w_x, t_scale]
    """
    cond_proj = (
        jnp.einsum("bchw,c->bhw", cond, w[1:1 + C_COND]) + w[C_IN] + w[C_IN + 2]
    )
    cond_proj = cond_proj.reshape(N_ROWS, LANES).astype(jnp.float32)
    w_scal = jnp.stack([w[0], w[C_IN + 1]]).astype(jnp.float32)
    return cond_proj, w_scal


@jax.jit
def wrap_forward(x, t, cond_proj, w_scal):
    """x: (B, H, W) f32, t: (B,) f32, cond_proj/w_scal from wrap_init."""
    # Contiguous reshape -> lane/sublane-dense slab (bitcast, no data movement).
    x_slab = x.reshape(N_ROWS, LANES)
    # One merged SMEM scalar operand: [w_x, t_scale, t_0 .. t_{B-1}].
    scal = jnp.concatenate([w_scal, t.astype(jnp.float32)])

    out_slab = pl.pallas_call(
        wrap_net_kernel,
        out_shape=jax.ShapeDtypeStruct((N_ROWS, LANES), jnp.float32),
        in_specs=[
            pl.BlockSpec(memory_space=pltpu.MemorySpace.SMEM),   # merged scalars
            pl.BlockSpec(memory_space=pltpu.MemorySpace.VMEM),   # x slab
            pl.BlockSpec(memory_space=pltpu.MemorySpace.VMEM),   # cond_proj slab
        ],
        out_specs=pl.BlockSpec(memory_space=pltpu.MemorySpace.VMEM),
    )(scal, x_slab, cond_proj)
    return out_slab.reshape(B, H, W)


def wrap_reference(x, cond, t, w):
    """Pure-JAX reference mirroring Wrap.forward with the synthetic net."""
    xc = jnp.concatenate([x[:, None, :, :], cond], axis=1)        # (B, C_IN, H, W)
    out = jnp.einsum("bchw,c->bhw", xc, w[:C_IN]) + w[C_IN]       # 1x1 conv -> 1 ch
    out = out + (t * w[C_IN + 1] + w[C_IN + 2])[:, None, None]    # time embedding
    return out                                                    # squeeze(1) implicit


if __name__ == "__main__":
    key = jax.random.PRNGKey(0)
    kx, kc, kt = jax.random.split(key, 3)
    x = jax.random.normal(kx, (B, H, W), dtype=jnp.float32)
    condition = jax.random.normal(kc, (B, C_COND, H, W), dtype=jnp.float32)
    t = jax.random.uniform(kt, (B,), dtype=jnp.float32)

    # Deterministic synthetic parameters for the wrapped net.
    w = (jnp.arange(N_PARAMS, dtype=jnp.float32) - 2.0) * 0.25

    # One-time static fold (per Wrap instance), then the per-step hot call.
    cond_proj, w_scal = wrap_init(condition, w)
    out = wrap_forward(x, t, cond_proj, w_scal)
    jax.block_until_ready(out)

    ref = wrap_reference(x, condition, t, w)
    assert out.shape == (B, H, W)
    assert jnp.allclose(out, ref, atol=1e-5, rtol=1e-5)
    print("KERNEL_OK")
</pallas_src>

<mosaic_0001>
module attributes {stable_mosaic.version = 11 : i64} {
  func.func @wrap_net_kernel(%arg0: memref<4xf32, #tpu.memory_space<smem>>, %arg1: memref<4x128xf32, #tpu.memory_space<vmem>>, %arg2: memref<4x128xf32, #tpu.memory_space<vmem>>, %arg3: memref<4x128xf32, #tpu.memory_space<vmem>>) attributes {dimension_semantics = [], scalar_prefetch = 0 : i64, scratch_operands = 0 : i64, tpu.core_type = #tpu.core_type<tc>} {
    %c0 = arith.constant 0 : index
    %0 = memref.load %arg0[%c0] : memref<4xf32, #tpu.memory_space<smem>>
    %c1 = arith.constant 1 : index
    %1 = memref.load %arg0[%c1] : memref<4xf32, #tpu.memory_space<smem>>
    %c2 = arith.constant 2 : index
    %2 = memref.load %arg0[%c2] : memref<4xf32, #tpu.memory_space<smem>>
    %c3 = arith.constant 3 : index
    %3 = memref.load %arg0[%c3] : memref<4xf32, #tpu.memory_space<smem>>
    %4 = tpu.iota {dimensions = array<i32: 0>} : vector<4x1xi32>
    %5 = vector.broadcast %2 : f32 to vector<4x1xf32>
    %c2_i32 = arith.constant 2 : i32
    %6 = vector.broadcast %c2_i32 : i32 to vector<4x1xi32>
    %7 = arith.cmpi sge, %4, %6 : vector<4x1xi32>
    %8 = vector.broadcast %3 : f32 to vector<4x1xf32>
    %9 = arith.select %7, %8, %5 : vector<4x1xi1>, vector<4x1xf32>
    %c0_0 = arith.constant 0 : index
    %c0_1 = arith.constant 0 : index
    %10 = vector.load %arg1[%c0_0, %c0_1] : memref<4x128xf32, #tpu.memory_space<vmem>>, vector<4x128xf32>
    %11 = vector.broadcast %0 : f32 to vector<4x128xf32>
    %12 = arith.mulf %10, %11 : vector<4x128xf32>
    %c0_2 = arith.constant 0 : index
    %c0_3 = arith.constant 0 : index
    %13 = vector.load %arg2[%c0_2, %c0_3] : memref<4x128xf32, #tpu.memory_space<vmem>>, vector<4x128xf32>
    %14 = arith.addf %12, %13 : vector<4x128xf32>
    %15 = vector.broadcast %1 : f32 to vector<4x1xf32>
    %16 = arith.mulf %9, %15 : vector<4x1xf32>
    %17 = vector.broadcast %16 : vector<4x1xf32> to vector<4x128xf32>
    %18 = arith.addf %14, %17 : vector<4x128xf32>
    %c0_4 = arith.constant 0 : index
    %c0_5 = arith.constant 0 : index
    %19 = vector.load %arg3[%c0_4, %c0_5] : memref<4x128xf32, #tpu.memory_space<vmem>>, vector<4x128xf32>
    tpu.vector_store %arg3[%c0_4, %c0_5], %18 {strides = array<i32>} : memref<4x128xf32, #tpu.memory_space<vmem>>, vector<4x128xf32>,
    return
  }
}

</mosaic_0001>

<llo_original>
// kernel: wrap_forward.1
$region0: #{wrap_forward.1}
  #allocation0 [shape = 'u32[]', space=smem, size = 0x4, offset = 0x4, fixed_abs, tag = 'smem constant byte address 0x4 - core index']
  #allocation1 [shape = 'u32[144,128]{1,0:T(1,128)}', space=vmem, size = 0x12000, scoped, tag = 'internal scratch']
  %s0 = inlined_call_operand.vmem [shape: f32[4], index: 0, kind: input, shape index: {}]
  %s1 = inlined_call_operand.vmem [shape: f32[4,128], index: 1, kind: input, shape index: {}]
  %s2 = inlined_call_operand.vmem [shape: f32[4,128], index: 2, kind: input, shape index: {}]
  %s3 = inlined_call_operand.vmem [shape: f32[4,128], index: 3, kind: output, shape index: {}]
  %s4 = sld [smem:[#allocation0]]
  $region26: #{wrap_forward.1} parent=0
    _
  %s6 = ssub.s32 1, %s4
  %s7 = scalar_select 0, %s6, %s4
  $region1: #{wrap_forward.1} parent=0
    #allocation2 [shape = 'u8[512]{0}', space=smem, size = 0x200, scoped, tag = 'input window, operand 0, single buffered']
    #allocation3 [shape = 's32[1]{0}', space=sflag, size = 0x4, scoped, tag = 'scoped memory for wrap_forward.1']
    %8 = vsyncpa [#allocation3], 0
    // Predicated region
    $region2: #{wrap_forward.1} parent=1 // pred_check
      _
    $region3: #{wrap_forward.1} parent=1 // pred_check_branch
      %10 = sbr.rel (0) target = $region5
    $region4: #{wrap_forward.1} parent=1 // pred_region
      %s12 = ssub.s32 16, 16
      %13 = vsyncadd [#allocation3], %s12
      %s15 = sshll.u32 %s0, 4
      %s16 = int_to_ptr.vmem [resolvable:$true] %s15
      %18 = dma.vmem_to_smem %s16, 16, [#allocation2], [#allocation3]
    $region5: #{wrap_forward.1} parent=1 // pred_fallthru
      _
    // Predicated region
    $region6: #{wrap_forward.1} parent=1 // pred_check
      _
    $region7: #{wrap_forward.1} parent=1 // pred_check_branch
      %20 = sbr.rel (0) target = $region9
    $region8: #{wrap_forward.1} parent=1 // pred_region
      _
    $region9: #{wrap_forward.1} parent=1 // pred_fallthru
      _
    // Predicated region
    $region10: #{wrap_forward.1} parent=1 // pred_check
      _
    $region11: #{wrap_forward.1} parent=1 // pred_check_branch
      %22 = sbr.rel (0) target = $region13
    $region12: #{wrap_forward.1} parent=1 // pred_region
      _
    $region13: #{wrap_forward.1} parent=1 // pred_fallthru
      _
    // Predicated region
    $region14: #{wrap_forward.1} parent=1 // pred_check
      _
    $region15: #{wrap_forward.1} parent=1 // pred_check_branch
      %24 = sbr.rel (0) target = $region17
    $region16: #{wrap_forward.1} parent=1 // pred_region
      %25 = dma.done [#allocation3], 16
    $region17: #{wrap_forward.1} parent=1 // pred_fallthru
      _
    %26 = sfence
    %s27 = sld [smem:[#allocation2]]
    %s28 = sld [smem:[#allocation2 + $0x1]]
    %s29 = sld [smem:[#allocation2 + $0x2]]
    %s30 = sld [smem:[#allocation2 + $0x3]]
    %v31 = vlaneseq
    %v32 = vshrl.u32 %v31, 7
    %v33 = vstv %s29
    %vm34 = vcmp.ge.s32.totalorder %v32, 2
    %v35 = vstv %s30
    %v36 = vsel %vm34, %v35, %v33
    %v37 = vld [vmem:[%s1] sm:$0xf]
    %v38 = vstv %s27
    %v39 = vmul.f32 %v37, %v38
    %v40 = vld [vmem:[%s2] sm:$0xf]
    %v41 = vadd.f32 %v39, %v40
    %v42 = vstv %s28
    %v43 = vmul.f32 %v36, %v42
    %v44 = vadd.f32 %v41, %v43
    %45 = vst [vmem:[%s3] sm:$0xf] %v44
    // Predicated region
    $region18: #{wrap_forward.1} parent=1 // pred_check
      _
    $region19: #{wrap_forward.1} parent=1 // pred_check_branch
      %47 = sbr.rel (0) target = $region21
    $region20: #{wrap_forward.1} parent=1 // pred_region
      _
    $region21: #{wrap_forward.1} parent=1 // pred_fallthru
      _
    // Predicated region
    $region22: #{wrap_forward.1} parent=1 // pred_check
      _
    $region23: #{wrap_forward.1} parent=1 // pred_check_branch
      %49 = sbr.rel (0) target = $region25
    $region24: #{wrap_forward.1} parent=1 // pred_region
      _
    $region25: #{wrap_forward.1} parent=1 // pred_fallthru
      _
    %50 = vsyncpa [#allocation3], 1

</llo_original>
